<compile_context>
chip_gen: v7x
topology: tpu7x:2x2x1
jax: 0.10.0
libtpu: 0.0.40
codegen_flags: <defaults>
</compile_context>

<pallas_src>
import jax
import jax.numpy as jnp
from jax import lax
from jax.experimental import pallas as pl
from jax.experimental.pallas import tpu as pltpu


# ---------------------------------------------------------------------------
# Per-generation VMEM budgets (v7x: 64 MiB per TC, v5e/v6e: 128 MiB)
# ---------------------------------------------------------------------------
def _vmem_budgets():
    cap = 64 * 1024 * 1024          # conservative default = v7x per-TC VMEM
    try:
        cap = int(getattr(pltpu.get_tpu_info(), "vmem_capacity_bytes", cap))
    except Exception:
        pass
    tile_budget = max(1 << 20, cap // 8)                    # per input-tile buffer
    vmem_limit = max(32 << 20, min((cap * 3) // 4, 96 << 20))
    return tile_budget, vmem_limit


_TILE_BUDGET_BYTES, _VMEM_LIMIT_BYTES = _vmem_budgets()
_COL_SLAB_BUDGET_BYTES = 2 << 20    # cap on the (8, tn) f32 accumulator slab


# ---------------------------------------------------------------------------
# Static tiling helpers
# ---------------------------------------------------------------------------
def _pick_col_width(wzc, itemsize, min_cols):
    """tn: divisor of wzc that is a multiple of 128 (or wzc itself, always a
    legal minor block dim), largest such that the (8, tn) slabs stay small,
    preferring >= min_cols column chunks (megacore when B is small)."""
    cands = [wzc]
    d = 128
    while d < wzc:
        if wzc % d == 0:
            cands.append(d)
        d += 128
    max_tn = max(1, min(_COL_SLAB_BUDGET_BYTES // (8 * 4),
                        _TILE_BUDGET_BYTES // (8 * itemsize)))
    fits = [t for t in cands if t <= max_tn]
    good = [t for t in fits if wzc // t >= min_cols]
    if good:
        return max(good)
    if fits:
        return max(fits)
    return min(cands)   # nothing fits the budget -> smallest legal width


def _pick_row_chunk(nh, slab_bytes):
    """tm: largest divisor of nh whose (tm, 8, tn) input tile fits the budget;
    1 always divides, so there is no unsafe fallback."""
    divs = [d for d in range(1, nh + 1) if nh % d == 0]
    within = [d for d in divs if d * slab_bytes <= _TILE_BUDGET_BYTES]
    return max(within) if within else 1


# ---------------------------------------------------------------------------
# Pallas kernel: streaming block-row sum (pure VPU accumulate, HBM-bound)
# ---------------------------------------------------------------------------
def _block_sum_kernel(x_ref, o_ref):
    """x_ref: (tm, 8, tn) tile of the (B, nH, 8, W*Z*C) view.
    o_ref: (8, tn) f32 partial sum, VMEM-resident across the reduction axis."""
    r = pl.program_id(2)
    part = jnp.sum(x_ref[...].astype(jnp.float32), axis=0)   # (8, tn)

    @pl.when(r == 0)
    def _first():
        o_ref[...] = part

    @pl.when(r != 0)
    def _accum():
        o_ref[...] = o_ref[...] + part


# ---------------------------------------------------------------------------
# Host-side affine composition of the three convs
# ---------------------------------------------------------------------------
def _compose_affine(w1, b1, w2, b2, w3, b3):
    """Fold conv1->conv2->conv3 into one (512C, 4C) matrix + (4C,) bias.
    W_total rows follow the hierarchical within-block flatten order
    (d3h,d3w,d3z, d2h,d2w,d2z, d1h,d1w,d1z, c)."""
    C = w1.shape[3]
    c2, c4 = 2 * C, 4 * C
    hi = lax.Precision.HIGHEST
    W1 = w1.astype(jnp.float32).reshape(8, C, c2)    # [d1, c,  c1]
    W2 = w2.astype(jnp.float32).reshape(8, c2, c4)   # [d2, c1, c2]
    W3 = w3.astype(jnp.float32).reshape(8, c4, c4)   # [d3, c2, c3]
    W_total = jnp.einsum("pac,qcd,rde->rqpae", W1, W2, W3,
                         precision=hi).reshape(512 * C, c4)
    beta2 = jnp.einsum("c,qcd->d", b1.astype(jnp.float32), W2,
                       precision=hi) + b2.astype(jnp.float32)
    b_total = jnp.einsum("d,rde->e", beta2, W3,
                         precision=hi) + b3.astype(jnp.float32)
    return W_total, b_total


# ---------------------------------------------------------------------------
# Forward pass
# ---------------------------------------------------------------------------
@jax.jit
def downscale_forward(feats, w1, b1, w2, b2, w3, b3):
    """Pallas implementation of DownScaleModule3DCustom.forward.

    feats: (B, H, W, Z, C) -> output (B, 1, 1, 1, 4*C)
    Weights w_i are DHWIO (2, 2, 2, c_in, c_out); biases b_i are (c_out,).
    """
    B, H, W, Z, C = feats.shape
    nH, nW, nZ = H // 8, W // 8, Z // 8
    assert nH > 0 and nW > 0 and nZ > 0, "spatial dims must be >= 8"
    # The three stride-2 VALID convs only consume the leading 8*floor(dim/8)
    # region -> cropping reproduces PyTorch's floor behaviour exactly (a no-op
    # when dims are already multiples of 8, so no extra HBM copy).
    Hc, Wc, Zc = nH * 8, nW * 8, nZ * 8
    feats_c = feats[:, :Hc, :Wc, :Zc, :]
    n3 = nH * nW * nZ
    wzc = Wc * Zc * C

    # Free (contiguous split/merge) view -- NO transpose is materialized.
    # Dim 2 is the within-block row index along H; W*Z*C keeps the native,
    # lane-dense memory order.
    x = feats_c.reshape(B, nH, 8, wzc)

    itemsize = x.dtype.itemsize
    tn = _pick_col_width(wzc, itemsize, min_cols=2 if B == 1 else 1)
    tm = _pick_row_chunk(nH, 8 * tn * itemsize)
    grid = (B, wzc // tn, nH // tm)          # reduction axis (over nH) last

    partial = pl.pallas_call(
        _block_sum_kernel,
        out_shape=jax.ShapeDtypeStruct((B, 8, wzc), jnp.float32),
        grid_spec=pltpu.PrefetchScalarGridSpec(
            num_scalar_prefetch=0,
            grid=grid,
            in_specs=[pl.BlockSpec((None, tm, 8, tn),
                                   lambda b, c, r: (b, r, 0, c))],
            out_specs=pl.BlockSpec((None, 8, tn),
                                   lambda b, c, r: (b, 0, c)),
        ),
        compiler_params=pltpu.CompilerParams(
            dimension_semantics=("parallel", "parallel", "arbitrary"),
            vmem_limit_bytes=_VMEM_LIMIT_BYTES,
        ),
    )(x)

    # --- tiny XLA epilogue (O(8*W*Z*C) then O(512C) data per batch) ---------
    P = partial.reshape(B, 8, nW, 8, nZ, 8, C)     # (b, hb, iw, wb, iz, zb, c)
    M = P.sum(axis=(2, 4)) * (1.0 / float(n3))     # (B, 8, 8, 8, C) block mean
    # bit-interleave permute to the hierarchical order of W_total's rows:
    # in-block index hb = 4*d3h + 2*d2h + d1h (same for w, z).
    M = M.reshape(B, 2, 2, 2, 2, 2, 2, 2, 2, 2, C)
    M = M.transpose(0, 1, 4, 7, 2, 5, 8, 3, 6, 9, 10)
    M = M.reshape(B, 512 * C)

    W_total, b_total = _compose_affine(w1, b1, w2, b2, w3, b3)
    out = jnp.dot(M, W_total, precision=lax.Precision.HIGHEST) + b_total
    # matches PyTorch output layout (b, 1, 1, 1, 4*in_dim)
    return out.astype(feats.dtype).reshape(B, 1, 1, 1, 4 * C)


# ---------------------------------------------------------------------------
# Deterministic synthetic parameters (DHWIO layout)
# ---------------------------------------------------------------------------
def init_params(key, in_dim, dtype=jnp.float32):
    dims = [
        (in_dim, in_dim * 2),
        (in_dim * 2, in_dim * 4),
        (in_dim * 4, in_dim * 4),
    ]
    params = {}
    for idx, (cin, cout) in enumerate(dims, start=1):
        key, k_w, k_b = jax.random.split(key, 3)
        fan_in = cin * 8
        scale = 1.0 / jnp.sqrt(fan_in)
        w = jax.random.uniform(k_w, (2, 2, 2, cin, cout), dtype,
                               minval=-scale, maxval=scale)
        b = jax.random.uniform(k_b, (cout,), dtype, minval=-scale, maxval=scale)
        params[f"w{idx}"] = w
        params[f"b{idx}"] = b
    return params


# ---------------------------------------------------------------------------
# Pure-JAX reference (lax.conv) for verification
# ---------------------------------------------------------------------------
def reference_forward(feats, w1, b1, w2, b2, w3, b3):
    def conv(x, w, b):
        y = lax.conv_general_dilated(
            x, w, window_strides=(2, 2, 2), padding="VALID",
            dimension_numbers=("NDHWC", "DHWIO", "NDHWC"),
            precision=lax.Precision.HIGHEST)
        return y + b
    y = conv(feats, w1, b1)
    y = conv(y, w2, b2)
    y = conv(y, w3, b3)
    y = jnp.mean(y, axis=(1, 2, 3), keepdims=True)  # AdaptiveAvgPool3d((1,1,1))
    return y  # (B, 1, 1, 1, 4C) channels-last


if __name__ == "__main__":
    key = jax.random.PRNGKey(0)
    B, H, W, Z, in_dim = 2, 16, 16, 16, 4

    key, k_feats = jax.random.split(key)
    feats = jax.random.normal(k_feats, (B, H, W, Z, in_dim), jnp.float32)
    params = init_params(key, in_dim)

    out = downscale_forward(
        feats,
        params["w1"], params["b1"],
        params["w2"], params["b2"],
        params["w3"], params["b3"],
    )
    out = jax.block_until_ready(out)

    ref = reference_forward(
        feats,
        params["w1"], params["b1"],
        params["w2"], params["b2"],
        params["w3"], params["b3"],
    )
    ref = jax.block_until_ready(ref)

    assert out.shape == (B, 1, 1, 1, 4 * in_dim), out.shape
    max_err = float(jnp.max(jnp.abs(out - ref)))
    assert jnp.allclose(out, ref, atol=1e-4, rtol=1e-4), max_err

    print("KERNEL_OK")
</pallas_src>

<mosaic_0001>
module attributes {stable_mosaic.version = 11 : i64} {
  func.func @_block_sum_kernel(%arg0: i32, %arg1: i32, %arg2: i32, %arg3: memref<1x2x8x1024xf32, #tpu.memory_space<vmem>>, %arg4: memref<1x8x1024xf32, #tpu.memory_space<vmem>>) attributes {dimension_semantics = [#tpu.dimension_semantics<parallel>, #tpu.dimension_semantics<parallel>, #tpu.dimension_semantics<arbitrary>], iteration_bounds = array<i64: 2, 1, 1>, scalar_prefetch = 0 : i64, scratch_operands = 0 : i64, tpu.core_type = #tpu.core_type<tc>, window_params = [{transform_indices = @transform_0, window_bounds = array<i64: 1, 2, 8, 1024>}, {transform_indices = @transform_1, window_bounds = array<i64: 1, 8, 1024>}]} {
    %c0 = arith.constant 0 : index
    %c0_0 = arith.constant 0 : index
    %c0_1 = arith.constant 0 : index
    %c0_2 = arith.constant 0 : index
    %0 = vector.load %arg3[%c0, %c0_0, %c0_1, %c0_2] : memref<1x2x8x1024xf32, #tpu.memory_space<vmem>>, vector<1x2x8x1024xf32>
    %1 = vector.shape_cast %0 : vector<1x2x8x1024xf32> to vector<2x8x1024xf32>
    %cst = arith.constant dense<0.000000e+00> : vector<8x1024xf32>
    %2 = vector.multi_reduction <add>, %1, %cst [0] : vector<2x8x1024xf32> to vector<8x1024xf32>
    %c0_i32 = arith.constant 0 : i32
    %3 = arith.cmpi eq, %arg2, %c0_i32 : i32
    %4 = arith.extui %3 : i1 to i32
    %c0_i32_3 = arith.constant 0 : i32
    %5 = arith.cmpi ne, %4, %c0_i32_3 : i32
    scf.if %5 {
      %c0_6 = arith.constant 0 : index
      %c0_7 = arith.constant 0 : index
      %c0_8 = arith.constant 0 : index
      %9 = vector.load %arg4[%c0_6, %c0_7, %c0_8] : memref<1x8x1024xf32, #tpu.memory_space<vmem>>, vector<1x8x1024xf32>
      %10 = vector.shape_cast %9 : vector<1x8x1024xf32> to vector<8x1024xf32>
      %11 = vector.shape_cast %2 : vector<8x1024xf32> to vector<1x8x1024xf32>
      tpu.vector_store %arg4[%c0_6, %c0_7, %c0_8], %11 {strides = array<i32>} : memref<1x8x1024xf32, #tpu.memory_space<vmem>>, vector<1x8x1024xf32>,
    } else {
    }
    %c0_i32_4 = arith.constant 0 : i32
    %6 = arith.cmpi ne, %arg2, %c0_i32_4 : i32
    %7 = arith.extui %6 : i1 to i32
    %c0_i32_5 = arith.constant 0 : i32
    %8 = arith.cmpi ne, %7, %c0_i32_5 : i32
    scf.if %8 {
      %c0_6 = arith.constant 0 : index
      %c0_7 = arith.constant 0 : index
      %c0_8 = arith.constant 0 : index
      %9 = vector.load %arg4[%c0_6, %c0_7, %c0_8] : memref<1x8x1024xf32, #tpu.memory_space<vmem>>, vector<1x8x1024xf32>
      %10 = vector.shape_cast %9 : vector<1x8x1024xf32> to vector<8x1024xf32>
      %11 = arith.addf %10, %2 : vector<8x1024xf32>
      %c0_9 = arith.constant 0 : index
      %c0_10 = arith.constant 0 : index
      %c0_11 = arith.constant 0 : index
      %12 = vector.load %arg4[%c0_9, %c0_10, %c0_11] : memref<1x8x1024xf32, #tpu.memory_space<vmem>>, vector<1x8x1024xf32>
      %13 = vector.shape_cast %12 : vector<1x8x1024xf32> to vector<8x1024xf32>
      %14 = vector.shape_cast %11 : vector<8x1024xf32> to vector<1x8x1024xf32>
      tpu.vector_store %arg4[%c0_9, %c0_10, %c0_11], %14 {strides = array<i32>} : memref<1x8x1024xf32, #tpu.memory_space<vmem>>, vector<1x8x1024xf32>,
    } else {
    }
    return
  }
  func.func @transform_0(%arg0: i32, %arg1: i32, %arg2: i32) -> (i32, i32, i32, i32) {
    %c0_i32 = arith.constant 0 : i32
    %c0_i32_0 = arith.constant 0 : i32
    return %arg0, %arg2, %c0_i32, %arg1 : i32, i32, i32, i32
  }
  func.func @transform_1(%arg0: i32, %arg1: i32, %arg2: i32) -> (i32, i32, i32) {
    %c0_i32 = arith.constant 0 : i32
    %c0_i32_0 = arith.constant 0 : i32
    return %arg0, %c0_i32, %arg1 : i32, i32, i32
  }
}

</mosaic_0001>

<llo_original>
// kernel: downscale_forward.1
$region0: #{downscale_forward.1}
  #allocation0 [shape = 'u32[]', space=smem, size = 0x4, offset = 0x4, fixed_abs, tag = 'smem constant byte address 0x4 - core index']
  #allocation1 [shape = 'u32[144,128]{1,0:T(1,128)}', space=vmem, size = 0x12000, scoped, tag = 'internal scratch']
  %s0 = inlined_call_operand.vmem [shape: f32[2,2,8,1024], index: 0, kind: input, shape index: {}]
  %s1 = inlined_call_operand.vmem [shape: f32[2,8,1024], index: 1, kind: output, shape index: {}]
  %s2 = sld [smem:[#allocation0]]
  $region45: #{downscale_forward.1} parent=0
    _
  %s4 = ssub.s32 1, %s2
  %s5 = scalar_select 0, %s4, %s2
  loop: start=0, step=1, limit=4
  $region2: #{downscale_forward.1} parent=0 // loop_pre_header
    _
  $region3: #{downscale_forward.1} parent=0 // loop_header
    %s7 = sphi 0, %s11
    %p8 = scmp.ge.s32.totalorder %s7, 4
    %s14 = sphi 0, %s33
    %s15 = sphi 0, %s29
    %s16 = sphi 0, %s25
    %s17 = sphi 0, %s14
    %s18 = sphi 0, %s15
    %s19 = sphi 0, %s16
    %s20 = sphi 0, %s17
    %s21 = sphi 0, %s18
    %s22 = sphi 0, %s19
    %s40 = sphi 0, %s42
    %s43 = sphi 0, %s40
    %s44 = sphi 0, %s43
    %s60 = sphi 0, %s44
    %s68 = sphi 0, %s70
    %s71 = sphi 0, %s68
    %s72 = sphi 0, %s71
    %s88 = sphi 0, %s72
  $region4: #{downscale_forward.1} parent=0 // loop_header_branch
    %10 = sbr.rel (%p8) target = $region8
  $region5: #{downscale_forward.1} parent=0 // loop_body
    %s12 = ssub.s32 %s7, 1
    %s13 = ssub.s32 %s7, 2
    %s23 = sadd.s32 1, %s16
    %p24 = scmp.ge.s32.totalorder %s23, 1
    %s25 = scalar_select %p24, 0, %s23
    %s26 = sadd.s32 1, %s15
    %s27 = scalar_select %p24, %s26, %s15
    %p28 = scmp.ge.s32.totalorder %s27, 1
    %s29 = scalar_select %p28, 0, %s27
    %s30 = sadd.s32 1, %s14
    %s31 = scalar_select %p28, %s30, %s14
    %p32 = scmp.ge.s32.totalorder %s31, 2
    %s33 = scalar_select %p32, 0, %s31
    %s34 = ssub.s32 %s14, %s33
    %s35 = ssub.s32 %s16, %s25
    %s36 = sor.u32 %s34, %s35
    %s37 = ssub.s32 %s15, %s29
    %s38 = sor.u32 %s36, %s37
    %p39 = scmp.eq.s32.totalorder %s38, 0
    %s41 = sadd.s32 %s40, 1
    %s42 = scalar_select %p39, %s40, %s41
    %p45 = pneg %p39
    %p46 = scmp.eq.s32.totalorder %s7, 1
    %p47 = por %p45, %p46
    %p48 = scmp.ne.s32.totalorder %s40, %s43
    %p49 = scmp.eq.s32.totalorder %s7, 0
    %p50 = por %p48, %p49
    %p51 = scmp.ne.s32.totalorder %s40, %s43
    %p52 = scmp.eq.s32.totalorder %s12, 1
    %p53 = por %p51, %p52
    %p54 = scmp.ne.s32.totalorder %s43, %s44
    %p55 = scmp.eq.s32.totalorder %s12, 0
    %p56 = por %p54, %p55
    %p57 = scmp.ne.s32.totalorder %s43, %s44
    %p58 = scmp.eq.s32.totalorder %s13, 1
    %p59 = por %p57, %p58
    %p61 = scmp.ne.s32.totalorder %s44, %s60
    %p62 = scmp.eq.s32.totalorder %s13, 0
    %p63 = por %p61, %p62
    %s64 = ssub.s32 %s14, %s33
    %s65 = ssub.s32 %s15, %s29
    %s66 = sor.u32 %s64, %s65
    %p67 = scmp.eq.s32.totalorder %s66, 0
    %s69 = sadd.s32 %s68, 1
    %s70 = scalar_select %p67, %s68, %s69
    %p73 = pneg %p67
    %p74 = scmp.eq.s32.totalorder %s7, 1
    %p75 = por %p73, %p74
    %p76 = scmp.ne.s32.totalorder %s68, %s71
    %p77 = scmp.eq.s32.totalorder %s7, 0
    %p78 = por %p76, %p77
    %p79 = scmp.ne.s32.totalorder %s68, %s71
    %p80 = scmp.eq.s32.totalorder %s12, 1
    %p81 = por %p79, %p80
    %p82 = scmp.ne.s32.totalorder %s71, %s72
    %p83 = scmp.eq.s32.totalorder %s12, 0
    %p84 = por %p82, %p83
    %p85 = scmp.ne.s32.totalorder %s71, %s72
    %p86 = scmp.eq.s32.totalorder %s13, 1
    %p87 = por %p85, %p86
    %p89 = scmp.ne.s32.totalorder %s72, %s88
    %p90 = scmp.eq.s32.totalorder %s13, 0
    %p91 = por %p89, %p90
    %p92 = scmp.le.s32.totalorder 1, %s7
    %p93 = scmp.lt.s32.totalorder %s7, 3
    %p94 = pnand %p92, %p93
    %p95 = pneg %p94
    // Predicated region
    $region9: #{downscale_forward.1} parent=5 // pred_check
      _
    $region10: #{downscale_forward.1} parent=5 // pred_check_branch
      %97 = sbr.rel (%p94) target = $region12
    $region11: #{downscale_forward.1} parent=5 // pred_region
      %s98 = ssub.s32 %s7, 1
    $region12: #{downscale_forward.1} parent=5 // pred_fallthru
      _
    %p99 = scmp.lt.s32.totalorder %s7, 2
    // Predicated region
    $region13: #{downscale_forward.1} parent=5 // pred_check
      %p100 = pneg %p99
    $region14: #{downscale_forward.1} parent=5 // pred_check_branch
      %102 = sbr.rel (%p100) target = $region16
    $region15: #{downscale_forward.1} parent=5 // pred_region
      // Predicated region
      $region17: #{downscale_forward.1} parent=15 // pred_check
        %p103 = pneg %p50
      $region18: #{downscale_forward.1} parent=15 // pred_check_branch
        %105 = sbr.rel (%p103) target = $region20
      $region19: #{downscale_forward.1} parent=15 // pred_region
        %s106 = smul.u32 2, %s16
        %s107 = smul.u32 8, %s15
        %p108 = scmp.lt.s32.totalorder %s14, 1
        %s109 = scalar_select %p108, %s14, 1
        %p110 = scmp.lt.s32.totalorder %s106, 1
        %s111 = scalar_select %p110, %s106, 1
        %p112 = scmp.lt.s32.totalorder %s107, 7
        %s113 = scalar_select %p112, %s107, 7
        %s114 = smul.addr %s111, 8
        %s115 = sadd.s32 %s113, %s114
        %s116 = smul.addr %s109, 16
        %s117 = sadd.s32 %s115, %s116
        %s118 = smul.addr %s117, 8
        %s119 = scalar_lea.vmem %s0, %s118
        %s120 = smul.u32 2, %s16
        %s121 = smul.u32 8, %s15
      $region20: #{downscale_forward.1} parent=15 // pred_fallthru
        _
    $region16: #{downscale_forward.1} parent=5 // pred_fallthru
      _
    %p122 = scmp.le.s32.totalorder 1, %s7
    %p123 = scmp.lt.s32.totalorder %s7, 3
    %p124 = pnand %p122, %p123
    %p125 = pneg %p124
    // Predicated region
    $region21: #{downscale_forward.1} parent=5 // pred_check
      _
    $region22: #{downscale_forward.1} parent=5 // pred_check_branch
      %127 = sbr.rel (%p124) target = $region24
    $region23: #{downscale_forward.1} parent=5 // pred_region
      %s128 = ssub.s32 %s7, 1
      %s129 = smul.u32 2, %s19
      %s130 = smul.u32 8, %s18
      %p131 = scmp.lt.s32.totalorder %s17, 1
      %s132 = scalar_select %p131, %s17, 1
      %p133 = scmp.lt.s32.totalorder %s129, 1
      %s134 = scalar_select %p133, %s129, 1
      %p135 = scmp.lt.s32.totalorder %s130, 7
      %s136 = scalar_select %p135, %s130, 7
      %s137 = smul.addr %s134, 8
      %s138 = sadd.s32 %s136, %s137
      %s139 = smul.addr %s132, 16
      %s140 = sadd.s32 %s138, %s139
      %s141 = smul.addr %s140, 8
      %s142 = scalar_lea.vmem %s0, %s141
      %p143 = pneg %p56
      %p144 = pneg %p53
      %p145 = pneg %p84
      %p146 = pneg %p81
      %s147 = smul.u32 8, %s18
      %p148 = scmp.lt.s32.totalorder %s17, 1
      %s149 = scalar_select %p148, %s17, 1
      %p150 = scmp.lt.s32.totalorder %s147, 7
      %s151 = scalar_select %p150, %s147, 7
      %s152 = smul.addr %s149, 8
      %s153 = sadd.s32 %s151, %s152
      %s154 = smul.addr %s153, 8
      %s155 = scalar_lea.vmem %s1, %s154
      %s156 = smul.u32 2, %s19
      %s157 = smul.u32 8, %s18
      %p158 = scmp.lt.s32.totalorder %s17, 1
      %s159 = scalar_select %p158, %s17, 1
      %p160 = scmp.lt.s32.totalorder %s156, 1
      %s161 = scalar_select %p160, %s156, 1
      %p162 = scmp.lt.s32.totalorder %s157, 7
      %s163 = scalar_select %p162, %s157, 7
      %s164 = smul.addr %s161, 8
      %s165 = sadd.s32 %s163, %s164
      %s166 = smul.addr %s159, 16
      %s167 = sadd.s32 %s165, %s166
      %s168 = smul.addr %s167, 8
      %s169 = scalar_lea.vmem %s0, %s168
      %s170 = smul.u32 2, %s19
      %s171 = smul.u32 8, %s18
      %s172 = smul.u32 8, %s18
      %p173 = scmp.lt.s32.totalorder %s17, 1
      %s174 = scalar_select %p173, %s17, 1
      %p175 = scmp.lt.s32.totalorder %s172, 7
      %s176 = scalar_select %p175, %s172, 7
      %s177 = smul.addr %s174, 8
      %s178 = sadd.s32 %s176, %s177
      %s179 = smul.addr %s178, 8
      %s180 = scalar_lea.vmem %s1, %s179
      %s181 = smul.u32 8, %s18
      %v182 = vld [vmem:[%s169] sm:$0xff]
      %v183 = vld [vmem:[%s169 + $0x8] sm:$0xff]
      %v184 = vld [vmem:[%s169 + $0x10] sm:$0xff]
      %v185 = vld [vmem:[%s169 + $0x18] sm:$0xff]
      %v186 = vld [vmem:[%s169 + $0x20] sm:$0xff]
      %v187 = vld [vmem:[%s169 + $0x28] sm:$0xff]
      %v188 = vld [vmem:[%s169 + $0x30] sm:$0xff]
      %v189 = vld [vmem:[%s169 + $0x38] sm:$0xff]
      %v190 = vld [vmem:[%s169 + $0x40] sm:$0xff]
      %v191 = vld [vmem:[%s169 + $0x48] sm:$0xff]
      %v192 = vld [vmem:[%s169 + $0x50] sm:$0xff]
      %v193 = vld [vmem:[%s169 + $0x58] sm:$0xff]
      %v194 = vld [vmem:[%s169 + $0x60] sm:$0xff]
      %v195 = vld [vmem:[%s169 + $0x68] sm:$0xff]
      %v196 = vld [vmem:[%s169 + $0x70] sm:$0xff]
      %v197 = vld [vmem:[%s169 + $0x78] sm:$0xff]
      %v198 = vadd.f32 %v182, %v190
      %v199 = vadd.f32 %v183, %v191
      %v200 = vadd.f32 %v184, %v192
      %v201 = vadd.f32 %v185, %v193
      %v202 = vadd.f32 %v186, %v194
      %v203 = vadd.f32 %v187, %v195
      %v204 = vadd.f32 %v188, %v196
      %v205 = vadd.f32 %v189, %v197
      %p206 = scmp.eq.s32.totalorder %s19, 0
      // Predicated region
      $region25: #{downscale_forward.1} parent=23 // pred_check
        %p207 = pneg %p206
      $region26: #{downscale_forward.1} parent=23 // pred_check_branch
        %209 = sbr.rel (%p207) target = $region28
      $region27: #{downscale_forward.1} parent=23 // pred_region
        %210 = vst [vmem:[%s180] sm:$0xff] %v198
        %211 = vst [vmem:[%s180 + $0x8] sm:$0xff] %v199
        %212 = vst [vmem:[%s180 + $0x10] sm:$0xff] %v200
        %213 = vst [vmem:[%s180 + $0x18] sm:$0xff] %v201
        %214 = vst [vmem:[%s180 + $0x20] sm:$0xff] %v202
        %215 = vst [vmem:[%s180 + $0x28] sm:$0xff] %v203
        %216 = vst [vmem:[%s180 + $0x30] sm:$0xff] %v204
        %217 = vst [vmem:[%s180 + $0x38] sm:$0xff] %v205
      $region28: #{downscale_forward.1} parent=23 // pred_fallthru
        _
      %p218 = scmp.ne.s32.totalorder %s19, 0
      // Predicated region
      $region29: #{downscale_forward.1} parent=23 // pred_check
        %p219 = pneg %p218
      $region30: #{downscale_forward.1} parent=23 // pred_check_branch
        %221 = sbr.rel (%p219) target = $region32
      $region31: #{downscale_forward.1} parent=23 // pred_region
        %v222 = vld [vmem:[%s180] sm:$0xff]
        %v223 = vld [vmem:[%s180 + $0x8] sm:$0xff]
        %v224 = vld [vmem:[%s180 + $0x10] sm:$0xff]
        %v225 = vld [vmem:[%s180 + $0x18] sm:$0xff]
        %v226 = vld [vmem:[%s180 + $0x20] sm:$0xff]
        %v227 = vld [vmem:[%s180 + $0x28] sm:$0xff]
        %v228 = vld [vmem:[%s180 + $0x30] sm:$0xff]
        %v229 = vld [vmem:[%s180 + $0x38] sm:$0xff]
        %v230 = vadd.f32 %v222, %v198
        %v231 = vadd.f32 %v223, %v199
        %v232 = vadd.f32 %v224, %v200
        %v233 = vadd.f32 %v225, %v201
        %v234 = vadd.f32 %v226, %v202
        %v235 = vadd.f32 %v227, %v203
        %v236 = vadd.f32 %v228, %v204
        %v237 = vadd.f32 %v229, %v205
        %238 = vst [vmem:[%s180] sm:$0xff] %v230
        %239 = vst [vmem:[%s180 + $0x8] sm:$0xff] %v231
        %240 = vst [vmem:[%s180 + $0x10] sm:$0xff] %v232
        %241 = vst [vmem:[%s180 + $0x18] sm:$0xff] %v233
        %242 = vst [vmem:[%s180 + $0x20] sm:$0xff] %v234
        %243 = vst [vmem:[%s180 + $0x28] sm:$0xff] %v235
        %244 = vst [vmem:[%s180 + $0x30] sm:$0xff] %v236
        %245 = vst [vmem:[%s180 + $0x38] sm:$0xff] %v237
      $region32: #{downscale_forward.1} parent=23 // pred_fallthru
        _
      %s246 = smul.u32 8, %s18
      %p247 = scmp.lt.s32.totalorder %s17, 1
      %s248 = scalar_select %p247, %s17, 1
      %p249 = scmp.lt.s32.totalorder %s246, 7
      %s250 = scalar_select %p249, %s246, 7
      %s251 = smul.addr %s248, 8
      %s252 = sadd.s32 %s250, %s251
      %s253 = smul.addr %s252, 8
      %s254 = scalar_lea.vmem %s1, %s253
      // Predicated region
      $region33: #{downscale_forward.1} parent=23 // pred_check
        %p255 = pneg %p81
      $region34: #{downscale_forward.1} parent=23 // pred_check_branch
        %257 = sbr.rel (%p255) target = $region36
      $region35: #{downscale_forward.1} parent=23 // pred_region
        %s258 = smul.u32 8, %s18
      $region36: #{downscale_forward.1} parent=23 // pred_fallthru
        _
    $region24: #{downscale_forward.1} parent=5 // pred_fallthru
      _
    %p259 = scmp.le.s32.totalorder 2, %s7
    // Predicated region
    $region37: #{downscale_forward.1} parent=5 // pred_check
      %p260 = pneg %p259
    $region38: #{downscale_forward.1} parent=5 // pred_check_branch
      %262 = sbr.rel (%p260) target = $region40
    $region39: #{downscale_forward.1} parent=5 // pred_region
      %s263 = ssub.s32 %s7, 2
      // Predicated region
      $region41: #{downscale_forward.1} parent=39 // pred_check
        %p264 = pneg %p87
      $region42: #{downscale_forward.1} parent=39 // pred_check_branch
        %266 = sbr.rel (%p264) target = $region44
      $region43: #{downscale_forward.1} parent=39 // pred_region
        %s267 = smul.u32 8, %s21
        %p268 = scmp.lt.s32.totalorder %s20, 1
        %s269 = scalar_select %p268, %s20, 1
        %p270 = scmp.lt.s32.totalorder %s267, 7
        %s271 = scalar_select %p270, %s267, 7
        %s272 = smul.addr %s269, 8
        %s273 = sadd.s32 %s271, %s272
        %s274 = smul.addr %s273, 8
        %s275 = scalar_lea.vmem %s1, %s274
      $region44: #{downscale_forward.1} parent=39 // pred_fallthru
        _
    $region40: #{downscale_forward.1} parent=5 // pred_fallthru
      _
  $region6: #{downscale_forward.1} parent=0 // loop_footer
    %s11 = sadd.s32 1, %s7
  $region7: #{downscale_forward.1} parent=0 // loop_footer_branch
    %6 = sbr.rel target = $region3
  $region8: #{downscale_forward.1} parent=0 // loop_exit
    _

</llo_original>
